<compile_context>
chip_gen: v7x
topology: tpu7x:2x2x1
jax: 0.10.0
libtpu: 0.0.40
codegen_flags: <defaults>
</compile_context>

<pallas_src>
import numpy as np
import jax
import jax.numpy as jnp
from jax.experimental import pallas as pl
from jax.experimental.pallas import tpu as pltpu

SEQ_LEN = 41   # implied by MaxPool1d(kernel_size = 41 - kerel_s + 1) reducing length to 1
IN_W = 4       # one-hot nucleotide width; the Conv2d kernel width is also 4


def _elu(v):
    # PyTorch ELU (alpha=1): x for x>0 else exp(x)-1.  min() keeps exp() finite on the
    # untaken branch of the where.
    return jnp.where(v > 0, v, jnp.exp(jnp.minimum(v, 0.0)) - 1.0)


def build_kernel(B, L_pad, K4, C_out):
    def kernel(slab_ref, w_ref, b_ref, out_ref):
        f32 = jnp.float32
        # (B, L_pad, 4K) bf16 -> (B*L_pad, 4K): L_pad % 8 == 0, so this is layout-trivial.
        sb = slab_ref[...].reshape(B * L_pad, K4)
        # merged conv: ONE MXU dot per block, f32 accumulation
        acc = jnp.dot(sb, w_ref[...], preferred_element_type=f32)     # (B*L_pad, C_out)
        # Global max over conv length (edge-padded duplicates don't change the max).
        mx = jnp.max(acc.reshape(B, L_pad, C_out), axis=1)            # (B, C_out)
        # Dropout(p=0.1) is identity at inference.
        # bias-add and ELU are monotone increasing -> commute with the max.
        out_ref[...] = _elu(mx + b_ref[...])

    return kernel


def seqblock_forward(x, w, bias, *, block_b=8):
    """x: (N, 1, 41, 4) float32 (PyTorch NCHW layout). Returns (N, out_channel) f32."""
    N, cin, L, Wdim = x.shape
    assert cin == 1 and L == SEQ_LEN and Wdim == IN_W, "seqBlock expects (N, 1, 41, 4)"
    C_out, _, K, kw = w.shape
    assert kw == IN_W
    L_out = SEQ_LEN - K + 1
    L_pad = ((L_out + 7) // 8) * 8          # sublane-aligned conv length
    K4 = K * IN_W

    B = min(block_b, N)
    n_blocks = pl.cdiv(N, B)
    Npad = n_blocks * B

    # drop the singleton image channel -> (N, 41, 4); cast matmul inputs to bf16
    x_nlw = x[:, 0].astype(jnp.bfloat16)
    if Npad != N:
        x_nlw = jnp.concatenate(
            [x_nlw, jnp.zeros((Npad - N, SEQ_LEN, IN_W), jnp.bfloat16)], axis=0)

    # im2col slab (layout plumbing in the wrapper): slab[n, l, dh*4 + w] = x[n, l+dh, w]
    slab = jnp.concatenate(
        [x_nlw[:, dh:dh + L_out, :] for dh in range(K)], axis=-1)     # (Npad, L_out, 4K)
    # Edge-pad the length axis (duplicate the last valid row) so L_pad % 8 == 0.
    # Duplicated rows cannot change the per-sample max, so no masking is needed.
    if L_pad != L_out:
        slab = jnp.pad(slab, ((0, 0), (0, L_pad - L_out), (0, 0)), mode="edge")

    # Conv weight (C_out, 1, K, 4) -> (4K, C_out); row index dh*4 + w matches the slab.
    w_flat = jnp.transpose(w[:, 0], (1, 2, 0)).reshape(K4, C_out).astype(jnp.bfloat16)
    bias2d = bias.reshape(1, C_out).astype(jnp.float32)

    kernel = build_kernel(B, L_pad, K4, C_out)

    def whole(a):  # untiled, constant block index (weights / bias)
        zeros = (0,) * a.ndim
        return pl.BlockSpec(a.shape, lambda i, _z=zeros: _z)

    out = pl.pallas_call(
        kernel,
        out_shape=jax.ShapeDtypeStruct((Npad, C_out), jnp.float32),
        grid=(n_blocks,),
        in_specs=[
            pl.BlockSpec((B, L_pad, K4), lambda i: (i, 0, 0)),
            whole(w_flat),
            whole(bias2d),
        ],
        out_specs=pl.BlockSpec((B, C_out), lambda i: (i, 0)),
        compiler_params=pltpu.CompilerParams(
            dimension_semantics=("parallel",),
        ),
    )(slab, w_flat, bias2d)

    return out[:N]


# ------------------------------- pure-JAX reference (f32) -------------------------------
def reference_forward(x, w, b):
    C_out, _, K, _ = w.shape
    L_out = x.shape[2] - K + 1
    xs = x[:, 0].astype(jnp.float32)                                   # (N, 41, 4)
    conv = sum(
        jnp.einsum("nlw,cw->nlc", xs[:, dh:dh + L_out, :],
                   w[:, 0, dh, :].astype(jnp.float32))
        for dh in range(K))
    conv = conv + b.astype(jnp.float32)[None, None, :]
    act = _elu(conv)                                                   # ELU (dropout = id)
    return jnp.max(act, axis=1)                                        # global max -> (N, C)


# ----------------------------------------- main -----------------------------------------
if __name__ == "__main__":
    # seqBlock(kerel_s=5, out_channel=8); input length 41 is implied by the max-pool size.
    N, KEREL_S, OUT_CH = 16, 5, 8

    key = jax.random.PRNGKey(0)
    kx, kw, kb = jax.random.split(key, 3)
    x = jax.random.normal(kx, (N, 1, SEQ_LEN, IN_W), jnp.float32)

    bound = 1.0 / np.sqrt(1 * KEREL_S * IN_W)   # PyTorch Conv2d default init bound
    w = jax.random.uniform(kw, (OUT_CH, 1, KEREL_S, IN_W), jnp.float32, -bound, bound)
    b = jax.random.uniform(kb, (OUT_CH,), jnp.float32, -bound, bound)

    out = seqblock_forward(x, w, b, block_b=8)   # grid = 2 -> both v7x TCs busy
    out = jax.block_until_ready(out)
    assert out.shape == (N, OUT_CH)

    ref = reference_forward(x, w, b)
    # tolerance is loose because matmul inputs are bf16 (f32 accumulation)
    np.testing.assert_allclose(np.asarray(out), np.asarray(ref), rtol=5e-2, atol=5e-2)

    print("KERNEL_OK")
</pallas_src>

<mosaic_0001>
module attributes {stable_mosaic.version = 11 : i64} {
  func.func @kernel(%arg0: i32, %arg1: memref<8x40x20xbf16, #tpu.memory_space<vmem>>, %arg2: memref<20x8xbf16, #tpu.memory_space<vmem>>, %arg3: memref<1x8xf32, #tpu.memory_space<vmem>>, %arg4: memref<8x8xf32, #tpu.memory_space<vmem>>) attributes {dimension_semantics = [#tpu.dimension_semantics<parallel>], iteration_bounds = array<i64: 2>, scalar_prefetch = 0 : i64, scratch_operands = 0 : i64, tpu.core_type = #tpu.core_type<tc>, window_params = [{transform_indices = @transform_0, window_bounds = array<i64: 8, 40, 20>}, {pipeline_mode = #tpu.pipeline_mode<synchronous>, transform_indices = @transform_1, window_bounds = array<i64: 20, 8>}, {pipeline_mode = #tpu.pipeline_mode<synchronous>, transform_indices = @transform_2, window_bounds = array<i64: 1, 8>}, {transform_indices = @transform_3, window_bounds = array<i64: 8, 8>}]} {
    %c0 = arith.constant 0 : index
    %c0_0 = arith.constant 0 : index
    %c0_1 = arith.constant 0 : index
    %0 = vector.load %arg1[%c0, %c0_0, %c0_1] : memref<8x40x20xbf16, #tpu.memory_space<vmem>>, vector<8x40x20xbf16>
    %1 = vector.shape_cast %0 : vector<8x40x20xbf16> to vector<320x20xbf16>
    %c0_2 = arith.constant 0 : index
    %c0_3 = arith.constant 0 : index
    %2 = vector.load %arg2[%c0_2, %c0_3] : memref<20x8xbf16, #tpu.memory_space<vmem>>, vector<20x8xbf16>
    %cst = arith.constant dense<0.000000e+00> : vector<320x8xf32>
    %3 = tpu.matmul %1, %2, %cst {dimension_numbers = #tpu.dot_dimension_numbers<[1], [0], [0], [1], [0, 0, 1, 1], [], []>} : vector<320x20xbf16>, vector<20x8xbf16>, vector<320x8xf32> -> vector<320x8xf32>
    %4 = vector.shape_cast %3 : vector<320x8xf32> to vector<8x40x8xf32>
    %cst_4 = arith.constant dense<0xFF800000> : vector<8x8xf32>
    %5 = vector.multi_reduction <maximumf>, %4, %cst_4 [1] : vector<8x40x8xf32> to vector<8x8xf32>
    %c0_5 = arith.constant 0 : index
    %c0_6 = arith.constant 0 : index
    %6 = vector.load %arg3[%c0_5, %c0_6] : memref<1x8xf32, #tpu.memory_space<vmem>>, vector<1x8xf32>
    %7 = vector.broadcast %6 : vector<1x8xf32> to vector<8x8xf32>
    %8 = arith.addf %5, %7 : vector<8x8xf32>
    %cst_7 = arith.constant 0.000000e+00 : f32
    %9 = vector.broadcast %cst_7 : f32 to vector<8x8xf32>
    %10 = arith.cmpf ogt, %8, %9 : vector<8x8xf32>
    %cst_8 = arith.constant 0.000000e+00 : f32
    %11 = vector.broadcast %cst_8 : f32 to vector<8x8xf32>
    %12 = arith.minimumf %8, %11 : vector<8x8xf32>
    %13 = math.exp %12 : vector<8x8xf32>
    %cst_9 = arith.constant 1.000000e+00 : f32
    %14 = vector.broadcast %cst_9 : f32 to vector<8x8xf32>
    %15 = arith.subf %13, %14 : vector<8x8xf32>
    %16 = arith.select %10, %8, %15 : vector<8x8xi1>, vector<8x8xf32>
    %c0_10 = arith.constant 0 : index
    %c0_11 = arith.constant 0 : index
    %17 = vector.load %arg4[%c0_10, %c0_11] : memref<8x8xf32, #tpu.memory_space<vmem>>, vector<8x8xf32>
    tpu.vector_store %arg4[%c0_10, %c0_11], %16 {strides = array<i32>} : memref<8x8xf32, #tpu.memory_space<vmem>>, vector<8x8xf32>,
    return
  }
  func.func @transform_0(%arg0: i32) -> (i32, i32, i32) {
    %c0_i32 = arith.constant 0 : i32
    %c0_i32_0 = arith.constant 0 : i32
    %c0_i32_1 = arith.constant 0 : i32
    return %arg0, %c0_i32, %c0_i32_0 : i32, i32, i32
  }
  func.func @transform_1(%arg0: i32) -> (i32, i32) {
    %c0_i32 = arith.constant 0 : i32
    %c0_i32_0 = arith.constant 0 : i32
    %c0_i32_1 = arith.constant 0 : i32
    return %c0_i32, %c0_i32_0 : i32, i32
  }
  func.func @transform_2(%arg0: i32) -> (i32, i32) {
    %c0_i32 = arith.constant 0 : i32
    %c0_i32_0 = arith.constant 0 : i32
    %c0_i32_1 = arith.constant 0 : i32
    return %c0_i32, %c0_i32_0 : i32, i32
  }
  func.func @transform_3(%arg0: i32) -> (i32, i32) {
    %c0_i32 = arith.constant 0 : i32
    %c0_i32_0 = arith.constant 0 : i32
    return %arg0, %c0_i32 : i32, i32
  }
}

</mosaic_0001>

<llo_original>
// kernel: tpu_custom_call.1
$region0: #{tpu_custom_call.1}
  #allocation0 [shape = 'u32[]', space=smem, size = 0x4, offset = 0x4, fixed_abs, tag = 'smem constant byte address 0x4 - core index']
  #allocation1 [shape = 'u32[144,128]{1,0:T(1,128)}', space=vmem, size = 0x12000, scoped, tag = 'internal scratch']
  %s0 = inlined_call_operand.vmem [shape: bf16[16,40,20], index: 0, kind: input, shape index: {}]
  %s1 = inlined_call_operand.vmem [shape: bf16[20,8], index: 1, kind: input, shape index: {}]
  %s2 = inlined_call_operand.vmem [shape: f32[1,8], index: 2, kind: input, shape index: {}]
  %s3 = inlined_call_operand.vmem [shape: f32[16,8], index: 3, kind: output, shape index: {}]
  %s4 = sld [smem:[#allocation0]]
  $region45: #{tpu_custom_call.1} parent=0
    _
  %s6 = ssub.s32 1, %s4
  %s7 = scalar_select 0, %s6, %s4
  loop: start=0, step=1, limit=4
  $region2: #{tpu_custom_call.1} parent=0 // loop_pre_header
    _
  $region3: #{tpu_custom_call.1} parent=0 // loop_header
    %s9 = sphi 0, %s13
    %p10 = scmp.ge.s32.totalorder %s9, 4
    %s19 = sphi 0, %s21
    %s22 = sphi 0, %s19
    %s23 = sphi 0, %s22
    %s39 = sphi 0, %s23
    %s43 = sphi 0, %s43
    %s45 = sphi 0, %s43
    %s46 = sphi 0, %s45
    %s60 = sphi 0, %s46
    %s64 = sphi 0, %s64
    %s66 = sphi 0, %s64
    %s67 = sphi 0, %s66
    %s81 = sphi 0, %s67
    %s87 = sphi 0, %s89
    %s90 = sphi 0, %s87
    %s91 = sphi 0, %s90
    %s107 = sphi 0, %s91
  $region4: #{tpu_custom_call.1} parent=0 // loop_header_branch
    %12 = sbr.rel (%p10) target = $region8
  $region5: #{tpu_custom_call.1} parent=0 // loop_body
    %s14 = ssub.s32 %s9, 1
    %s15 = ssub.s32 %s9, 2
    %s16 = sadd.s32 %s9, 1
    %s17 = ssub.s32 %s9, %s16
    %p18 = scmp.eq.s32.totalorder %s17, 0
    %s20 = sadd.s32 %s19, 1
    %s21 = scalar_select %p18, %s19, %s20
    %p24 = pneg %p18
    %p25 = scmp.eq.s32.totalorder %s9, 1
    %p26 = por %p24, %p25
    %p27 = scmp.ne.s32.totalorder %s19, %s22
    %p28 = scmp.eq.s32.totalorder %s9, 0
    %p29 = por %p27, %p28
    %p30 = scmp.ne.s32.totalorder %s19, %s22
    %p31 = scmp.eq.s32.totalorder %s14, 1
    %p32 = por %p30, %p31
    %p33 = scmp.ne.s32.totalorder %s22, %s23
    %p34 = scmp.eq.s32.totalorder %s14, 0
    %p35 = por %p33, %p34
    %p36 = scmp.ne.s32.totalorder %s22, %s23
    %p37 = scmp.eq.s32.totalorder %s15, 1
    %p38 = por %p36, %p37
    %p40 = scmp.ne.s32.totalorder %s23, %s39
    %p41 = scmp.eq.s32.totalorder %s15, 0
    %p42 = por %p40, %p41
    %s44 = sadd.s32 %s43, 1
    %p47 = scmp.eq.s32.totalorder %s9, 1
    %p48 = scmp.ne.s32.totalorder %s43, %s45
    %p49 = scmp.eq.s32.totalorder %s9, 0
    %p50 = por %p48, %p49
    %p51 = scmp.ne.s32.totalorder %s43, %s45
    %p52 = scmp.eq.s32.totalorder %s14, 1
    %p53 = por %p51, %p52
    %p54 = scmp.ne.s32.totalorder %s45, %s46
    %p55 = scmp.eq.s32.totalorder %s14, 0
    %p56 = por %p54, %p55
    %p57 = scmp.ne.s32.totalorder %s45, %s46
    %p58 = scmp.eq.s32.totalorder %s15, 1
    %p59 = por %p57, %p58
    %p61 = scmp.ne.s32.totalorder %s46, %s60
    %p62 = scmp.eq.s32.totalorder %s15, 0
    %p63 = por %p61, %p62
    %s65 = sadd.s32 %s64, 1
    %p68 = scmp.eq.s32.totalorder %s9, 1
    %p69 = scmp.ne.s32.totalorder %s64, %s66
    %p70 = scmp.eq.s32.totalorder %s9, 0
    %p71 = por %p69, %p70
    %p72 = scmp.ne.s32.totalorder %s64, %s66
    %p73 = scmp.eq.s32.totalorder %s14, 1
    %p74 = por %p72, %p73
    %p75 = scmp.ne.s32.totalorder %s66, %s67
    %p76 = scmp.eq.s32.totalorder %s14, 0
    %p77 = por %p75, %p76
    %p78 = scmp.ne.s32.totalorder %s66, %s67
    %p79 = scmp.eq.s32.totalorder %s15, 1
    %p80 = por %p78, %p79
    %p82 = scmp.ne.s32.totalorder %s67, %s81
    %p83 = scmp.eq.s32.totalorder %s15, 0
    %p84 = por %p82, %p83
    %s85 = ssub.s32 %s9, %s16
    %p86 = scmp.eq.s32.totalorder %s85, 0
    %s88 = sadd.s32 %s87, 1
    %s89 = scalar_select %p86, %s87, %s88
    %p92 = pneg %p86
    %p93 = scmp.eq.s32.totalorder %s9, 1
    %p94 = por %p92, %p93
    %p95 = scmp.ne.s32.totalorder %s87, %s90
    %p96 = scmp.eq.s32.totalorder %s9, 0
    %p97 = por %p95, %p96
    %p98 = scmp.ne.s32.totalorder %s87, %s90
    %p99 = scmp.eq.s32.totalorder %s14, 1
    %p100 = por %p98, %p99
    %p101 = scmp.ne.s32.totalorder %s90, %s91
    %p102 = scmp.eq.s32.totalorder %s14, 0
    %p103 = por %p101, %p102
    %p104 = scmp.ne.s32.totalorder %s90, %s91
    %p105 = scmp.eq.s32.totalorder %s15, 1
    %p106 = por %p104, %p105
    %p108 = scmp.ne.s32.totalorder %s91, %s107
    %p109 = scmp.eq.s32.totalorder %s15, 0
    %p110 = por %p108, %p109
    %p111 = scmp.le.s32.totalorder 1, %s9
    %p112 = scmp.lt.s32.totalorder %s9, 3
    %p113 = pnand %p111, %p112
    %p114 = pneg %p113
    // Predicated region
    $region9: #{tpu_custom_call.1} parent=5 // pred_check
      _
    $region10: #{tpu_custom_call.1} parent=5 // pred_check_branch
      %116 = sbr.rel (%p113) target = $region12
    $region11: #{tpu_custom_call.1} parent=5 // pred_region
      %s117 = ssub.s32 %s9, 1
      // Predicated region
      $region13: #{tpu_custom_call.1} parent=11 // pred_check
        %p118 = pneg %p56
      $region14: #{tpu_custom_call.1} parent=11 // pred_check_branch
        %120 = sbr.rel (%p118) target = $region16
      $region15: #{tpu_custom_call.1} parent=11 // pred_region
        _
      $region16: #{tpu_custom_call.1} parent=11 // pred_fallthru
        _
      // Predicated region
      $region17: #{tpu_custom_call.1} parent=11 // pred_check
        %p121 = pneg %p77
      $region18: #{tpu_custom_call.1} parent=11 // pred_check_branch
        %123 = sbr.rel (%p121) target = $region20
      $region19: #{tpu_custom_call.1} parent=11 // pred_region
        _
      $region20: #{tpu_custom_call.1} parent=11 // pred_fallthru
        _
    $region12: #{tpu_custom_call.1} parent=5 // pred_fallthru
      _
    %p124 = scmp.lt.s32.totalorder %s9, 2
    // Predicated region
    $region21: #{tpu_custom_call.1} parent=5 // pred_check
      %p125 = pneg %p124
    $region22: #{tpu_custom_call.1} parent=5 // pred_check_branch
      %127 = sbr.rel (%p125) target = $region24
    $region23: #{tpu_custom_call.1} parent=5 // pred_region
      // Predicated region
      $region25: #{tpu_custom_call.1} parent=23 // pred_check
        %p128 = pneg %p29
      $region26: #{tpu_custom_call.1} parent=23 // pred_check_branch
        %130 = sbr.rel (%p128) target = $region28
      $region27: #{tpu_custom_call.1} parent=23 // pred_region
        %s131 = smul.u32 8, %s9
        %p132 = scmp.lt.s32.totalorder %s131, 15
        %s133 = scalar_select %p132, %s131, 15
        %s134 = smul.addr %s133, 5
        %s135 = smul.addr %s134, 4
        %s136 = scalar_lea.vmem %s0, %s135
        %s137 = smul.u32 8, %s9
      $region28: #{tpu_custom_call.1} parent=23 // pred_fallthru
        _
    $region24: #{tpu_custom_call.1} parent=5 // pred_fallthru
      _
    %p138 = scmp.le.s32.totalorder 1, %s9
    %p139 = scmp.lt.s32.totalorder %s9, 3
    %p140 = pnand %p138, %p139
    %p141 = pneg %p140
    // Predicated region
    $region29: #{tpu_custom_call.1} parent=5 // pred_check
      _
    $region30: #{tpu_custom_call.1} parent=5 // pred_check_branch
      %143 = sbr.rel (%p140) target = $region32
    $region31: #{tpu_custom_call.1} parent=5 // pred_region
      %s144 = ssub.s32 %s9, 1
      %s145 = smul.u32 8, %s14
      %p146 = scmp.lt.s32.totalorder %s145, 15
      %s147 = scalar_select %p146, %s145, 15
      %s148 = smul.addr %s147, 5
      %s149 = smul.addr %s148, 4
      %s150 = scalar_lea.vmem %s0, %s149
      %p151 = pneg %p35
      %p152 = pneg %p32
      %p153 = pneg %p56
      %p154 = pneg %p53
      %p155 = pneg %p77
      %p156 = pneg %p74
      %p157 = pneg %p103
      %p158 = pneg %p100
      %p159 = scmp.lt.s32.totalorder %s14, 1
      %s160 = scalar_select %p159, %s14, 1
      %s161 = smul.addr %s160, 8
      %s162 = scalar_lea.vmem %s3, %s161
      %s163 = smul.u32 8, %s14
      %p164 = scmp.lt.s32.totalorder %s163, 15
      %s165 = scalar_select %p164, %s163, 15
      %s166 = smul.addr %s165, 5
      %s167 = smul.addr %s166, 4
      %s168 = scalar_lea.vmem %s0, %s167
      %s169 = smul.u32 8, %s14
      %p170 = scmp.lt.s32.totalorder %s14, 1
      %s171 = scalar_select %p170, %s14, 1
      %s172 = smul.addr %s171, 8
      %s173 = scalar_lea.vmem %s3, %s172
      %v175 = vld [vmem:[%s168] sm:$0xf]
      %v176 = vld [vmem:[%s168 + $0x4] sm:$0xf]
      %v177 = vld [vmem:[%s168 + $0x8] sm:$0xf]
      %v178 = vld [vmem:[%s168 + $0xc] sm:$0xf]
      %v179 = vld [vmem:[%s168 + $0x10] sm:$0xf]
      %v180 = vld [vmem:[%s168 + $0x14] sm:$0xf]
      %v181 = vld [vmem:[%s168 + $0x18] sm:$0xf]
      %v182 = vld [vmem:[%s168 + $0x1c] sm:$0xf]
      %v183 = vld [vmem:[%s168 + $0x20] sm:$0xf]
      %v184 = vld [vmem:[%s168 + $0x24] sm:$0xf]
      %v185 = vld [vmem:[%s168 + $0x28] sm:$0xf]
      %v186 = vld [vmem:[%s168 + $0x2c] sm:$0xf]
      %v187 = vld [vmem:[%s168 + $0x30] sm:$0xf]
      %v188 = vld [vmem:[%s168 + $0x34] sm:$0xf]
      %v189 = vld [vmem:[%s168 + $0x38] sm:$0xf]
      %v190 = vld [vmem:[%s168 + $0x3c] sm:$0xf]
      %v191 = vld [vmem:[%s168 + $0x40] sm:$0xf]
      %v192 = vld [vmem:[%s168 + $0x44] sm:$0xf]
      %v193 = vld [vmem:[%s168 + $0x48] sm:$0xf]
      %v194 = vld [vmem:[%s168 + $0x4c] sm:$0xf]
      %v195 = vld [vmem:[%s168 + $0x50] sm:$0xf]
      %v196 = vld [vmem:[%s168 + $0x54] sm:$0xf]
      %v197 = vld [vmem:[%s168 + $0x58] sm:$0xf]
      %v198 = vld [vmem:[%s168 + $0x5c] sm:$0xf]
      %v199 = vld [vmem:[%s168 + $0x60] sm:$0xf]
      %v200 = vld [vmem:[%s168 + $0x64] sm:$0xf]
      %v201 = vld [vmem:[%s168 + $0x68] sm:$0xf]
      %v202 = vld [vmem:[%s168 + $0x6c] sm:$0xf]
      %v203 = vld [vmem:[%s168 + $0x70] sm:$0xf]
      %v204 = vld [vmem:[%s168 + $0x74] sm:$0xf]
      %v205 = vld [vmem:[%s168 + $0x78] sm:$0xf]
      %v206 = vld [vmem:[%s168 + $0x7c] sm:$0xf]
      %v207 = vld [vmem:[%s168 + $0x80] sm:$0xf]
      %v208 = vld [vmem:[%s168 + $0x84] sm:$0xf]
      %v209 = vld [vmem:[%s168 + $0x88] sm:$0xf]
      %v210 = vld [vmem:[%s168 + $0x8c] sm:$0xf]
      %v211 = vld [vmem:[%s168 + $0x90] sm:$0xf]
      %v212 = vld [vmem:[%s168 + $0x94] sm:$0xf]
      %v213 = vld [vmem:[%s168 + $0x98] sm:$0xf]
      %v214 = vld [vmem:[%s168 + $0x9c] sm:$0xf]
      %v215 = vld [vmem:[%s1] sm:$0xf]
      %v216 = vld [vmem:[%s1 + $0x4] sm:$0xf]
      %v217 = vld [vmem:[%s1 + $0x8] sm:$0x3]
      %v258 = vunpack.c.l.b16 %v175
      %v259 = vunpack.c.l.b16 %v176
      %v260 = vunpack.c.l.b16 %v177
      %v261 = vunpack.c.l.b16 %v178
      %v262 = vunpack.c.l.b16 %v179
      %v263 = vunpack.c.l.b16 %v180
      %v264 = vunpack.c.l.b16 %v181
      %v265 = vunpack.c.l.b16 %v182
      %v266 = vunpack.c.l.b16 %v183
      %v267 = vunpack.c.l.b16 %v184
      %v268 = vunpack.c.l.b16 %v185
      %v269 = vunpack.c.l.b16 %v186
      %v270 = vunpack.c.l.b16 %v187
      %v271 = vunpack.c.l.b16 %v188
      %v272 = vunpack.c.l.b16 %v189
      %v273 = vunpack.c.l.b16 %v190
      %v274 = vunpack.c.l.b16 %v191
      %v275 = vunpack.c.l.b16 %v192
      %v276 = vunpack.c.l.b16 %v193
      %v277 = vunpack.c.l.b16 %v194
      %v278 = vunpack.c.l.b16 %v195
      %v279 = vunpack.c.l.b16 %v196
      %v280 = vunpack.c.l.b16 %v197
      %v281 = vunpack.c.l.b16 %v198
      %v282 = vunpack.c.l.b16 %v199
      %v283 = vunpack.c.l.b16 %v200
      %v284 = vunpack.c.l.b16 %v201
      %v285 = vunpack.c.l.b16 %v202
      %v286 = vunpack.c.l.b16 %v203
      %v287 = vunpack.c.l.b16 %v204
      %v288 = vunpack.c.l.b16 %v205
      %v289 = vunpack.c.l.b16 %v206
      %v290 = vunpack.c.l.b16 %v207
      %v291 = vunpack.c.l.b16 %v208
      %v292 = vunpack.c.l.b16 %v209
      %v293 = vunpack.c.l.b16 %v210
      %v294 = vunpack.c.l.b16 %v211
      %v295 = vunpack.c.l.b16 %v212
      %v296 = vunpack.c.l.b16 %v213
      %v297 = vunpack.c.l.b16 %v214
      %v298 = vpack.c.b16 %v259, %v258
      %v299 = vpack.c.b16 %v261, %v260
      %v300 = vpack.c.b16 %v263, %v262
      %v301 = vpack.c.b16 %v265, %v264
      %v302 = vpack.c.b16 %v267, %v266
      %v303 = vpack.c.b16 %v269, %v268
      %v304 = vpack.c.b16 %v271, %v270
      %v305 = vpack.c.b16 %v273, %v272
      %v306 = vpack.c.b16 %v275, %v274
      %v307 = vpack.c.b16 %v277, %v276
      %v308 = vpack.c.b16 %v279, %v278
      %v309 = vpack.c.b16 %v281, %v280
      %v310 = vpack.c.b16 %v283, %v282
      %v311 = vpack.c.b16 %v285, %v284
      %v312 = vpack.c.b16 %v287, %v286
      %v313 = vpack.c.b16 %v289, %v288
      %v314 = vpack.c.b16 %v291, %v290
      %v315 = vpack.c.b16 %v293, %v292
      %v316 = vpack.c.b16 %v295, %v294
      %v317 = vpack.c.b16 %v297, %v296
      %v321 = vunpack.c.l.b16 %v215
      %v322 = vunpack.c.l.b16 %v216
      %v323 = vunpack.c.l.b16 %v217
      %v324 = vpack.c.b16 %v322, %v321
      %v325 = vpack.c.b16 %v323, %v323
      %vm327 = vcmask 162816
      %v329 = vsel %vm327, %v298, 0
      %v332 = vsel %vm327, %v299, 0
      %v335 = vsel %vm327, %v300, 0
      %v338 = vsel %vm327, %v301, 0
      %v341 = vsel %vm327, %v302, 0
      %v344 = vsel %vm327, %v303, 0
      %v347 = vsel %vm327, %v304, 0
      %v350 = vsel %vm327, %v305, 0
      %v353 = vsel %vm327, %v306, 0
      %v356 = vsel %vm327, %v307, 0
      %v359 = vsel %vm327, %v308, 0
      %v362 = vsel %vm327, %v309, 0
      %v365 = vsel %vm327, %v310, 0
      %v368 = vsel %vm327, %v311, 0
      %v371 = vsel %vm327, %v312, 0
      %v374 = vsel %vm327, %v313, 0
      %v377 = vsel %vm327, %v314, 0
      %v380 = vsel %vm327, %v315, 0
      %v383 = vsel %vm327, %v316, 0
      %v386 = vsel %vm327, %v317, 0
      %vm388 = vcmask 1041408
      %v390 = vsel %vm388, %v325, 0
      %392 = vmatprep.subr.bf16.mxu0 0
      %393 = vmatpush1.bf16.msra.mxu0 %v324
      %394 = vmatprep.subr.bf16.mxu0 0
      %395 = vmatpush1.bf16.msra.mxu0 %v390
      %396 = vmatprep.subr.bf16.mxu0 0
      %397 = vmatpush1.bf16.msra.mxu0 0
      %398 = vmatprep.subr.bf16.mxu0 0
      %399 = vmatpush1.bf16.msra.mxu0 0
      %400 = vmatprep.subr.bf16.mxu0 0
      %401 = vmatpush1.bf16.msra.mxu0 0
      %402 = vmatprep.subr.bf16.mxu0 0
      %403 = vmatpush1.bf16.msra.mxu0 0
      %404 = vmatprep.subr.bf16.mxu0 0
      %405 = vmatpush1.bf16.msra.mxu0 0
      %406 = vmatprep.subr.bf16.mxu0 0
      %407 = vmatpush1.bf16.msra.mxu0 0
      %408 = vmatprep.subr.bf16.mxu0 0
      %409 = vmatpush1.bf16.msra.mxu0 0
      %410 = vmatprep.subr.bf16.mxu0 0
      %411 = vmatpush1.bf16.msra.mxu0 0
      %412 = vmatprep.subr.bf16.mxu0 0
      %413 = vmatpush1.bf16.msra.mxu0 0
      %414 = vmatprep.subr.bf16.mxu0 0
      %415 = vmatpush1.bf16.msra.mxu0 0
      %416 = vmatprep.subr.bf16.mxu0 0
      %417 = vmatpush1.bf16.msra.mxu0 0
      %418 = vmatprep.subr.bf16.mxu0 0
      %419 = vmatpush1.bf16.msra.mxu0 0
      %420 = vmatprep.subr.bf16.mxu0 0
      %421 = vmatpush1.bf16.msra.mxu0 0
      %422 = vmatprep.subr.bf16.mxu0 0
      %423 = vmatpush1.bf16.msra.mxu0 0
      %424 = vmatprep.mubr.bf16.mxu0 0
      %425 = vmatmul.mubr.bf16.gmra.mrb[0].mxu0 %v329
      %v426 = vpop.f32.mrb[0].mxu0
      %v427 = vadd.f32 0.0, %v426
      %v428 = vpop.f32.mrb[0].mxu0
      %v429 = vpop.f32.mrb[0].mxu0
      %v430 = vadd.f32 0.0, %v429
      %v431 = vpop.f32.mrb[0].mxu0
      %432 = vmatprep.mubr.bf16.mxu0 0
      %433 = vmatmul.mubr.bf16.gmra.mrb[0].mxu0 %v332
      %v434 = vpop.f32.mrb[0].mxu0
      %v435 = vadd.f32 0.0, %v434
      %v436 = vpop.f32.mrb[0].mxu0
      %v437 = vpop.f32.mrb[0].mxu0
      %v438 = vadd.f32 0.0, %v437
      %v439 = vpop.f32.mrb[0].mxu0
      %440 = vmatprep.mubr.bf16.mxu0 0
      %441 = vmatmul.mubr.bf16.gmra.mrb[0].mxu0 %v335
      %v442 = vpop.f32.mrb[0].mxu0
      %v443 = vadd.f32 0.0, %v442
      %v444 = vpop.f32.mrb[0].mxu0
      %v445 = vpop.f32.mrb[0].mxu0
      %v446 = vadd.f32 0.0, %v445
      %v447 = vpop.f32.mrb[0].mxu0
      %448 = vmatprep.mubr.bf16.mxu0 0
      %449 = vmatmul.mubr.bf16.gmra.mrb[0].mxu0 %v338
      %v450 = vpop.f32.mrb[0].mxu0
      %v451 = vadd.f32 0.0, %v450
      %v452 = vpop.f32.mrb[0].mxu0
      %v453 = vpop.f32.mrb[0].mxu0
      %v454 = vadd.f32 0.0, %v453
      %v455 = vpop.f32.mrb[0].mxu0
      %456 = vmatprep.mubr.bf16.mxu0 0
      %457 = vmatmul.mubr.bf16.gmra.mrb[0].mxu0 %v341
      %v458 = vpop.f32.mrb[0].mxu0
      %v459 = vadd.f32 0.0, %v458
      %v460 = vpop.f32.mrb[0].mxu0
      %v461 = vpop.f32.mrb[0].mxu0
      %v462 = vadd.f32 0.0, %v461
      %v463 = vpop.f32.mrb[0].mxu0
      %464 = vmatprep.mubr.bf16.mxu0 0
      %465 = vmatmul.mubr.bf16.gmra.mrb[0].mxu0 %v344
      %v466 = vpop.f32.mrb[0].mxu0
      %v467 = vadd.f32 0.0, %v466
      %v468 = vpop.f32.mrb[0].mxu0
      %v469 = vpop.f32.mrb[0].mxu0
      %v470 = vadd.f32 0.0, %v469
      %v471 = vpop.f32.mrb[0].mxu0
      %472 = vmatprep.mubr.bf16.mxu0 0
      %473 = vmatmul.mubr.bf16.gmra.mrb[0].mxu0 %v347
      %v474 = vpop.f32.mrb[0].mxu0
      %v475 = vadd.f32 0.0, %v474
      %v476 = vpop.f32.mrb[0].mxu0
      %v477 = vpop.f32.mrb[0].mxu0
      %v478 = vadd.f32 0.0, %v477
      %v479 = vpop.f32.mrb[0].mxu0
      %480 = vmatprep.mubr.bf16.mxu0 0
      %481 = vmatmul.mubr.bf16.gmra.mrb[0].mxu0 %v350
      %v482 = vpop.f32.mrb[0].mxu0
      %v483 = vadd.f32 0.0, %v482
      %v484 = vpop.f32.mrb[0].mxu0
      %v485 = vpop.f32.mrb[0].mxu0
      %v486 = vadd.f32 0.0, %v485
      %v487 = vpop.f32.mrb[0].mxu0
      %488 = vmatprep.mubr.bf16.mxu0 0
      %489 = vmatmul.mubr.bf16.gmra.mrb[0].mxu0 %v353
      %v490 = vpop.f32.mrb[0].mxu0
      %v491 = vadd.f32 0.0, %v490
      %v492 = vpop.f32.mrb[0].mxu0
      %v493 = vpop.f32.mrb[0].mxu0
      %v494 = vadd.f32 0.0, %v493
      %v495 = vpop.f32.mrb[0].mxu0
      %496 = vmatprep.mubr.bf16.mxu0 0
      %497 = vmatmul.mubr.bf16.gmra.mrb[0].mxu0 %v356
      %v498 = vpop.f32.mrb[0].mxu0
      %v499 = vadd.f32 0.0, %v498
      %v500 = vpop.f32.mrb[0].mxu0
      %v501 = vpop.f32.mrb[0].mxu0
      %v502 = vadd.f32 0.0, %v501
      %v503 = vpop.f32.mrb[0].mxu0
      %504 = vmatprep.mubr.bf16.mxu0 0
      %505 = vmatmul.mubr.bf16.gmra.mrb[0].mxu0 %v359
      %v506 = vpop.f32.mrb[0].mxu0
      %v507 = vadd.f32 0.0, %v506
      %v508 = vpop.f32.mrb[0].mxu0
      %v509 = vpop.f32.mrb[0].mxu0
      %v510 = vadd.f32 0.0, %v509
      %v511 = vpop.f32.mrb[0].mxu0
      %512 = vmatprep.mubr.bf16.mxu0 0
      %513 = vmatmul.mubr.bf16.gmra.mrb[0].mxu0 %v362
      %v514 = vpop.f32.mrb[0].mxu0
      %v515 = vadd.f32 0.0, %v514
      %v516 = vpop.f32.mrb[0].mxu0
      %v517 = vpop.f32.mrb[0].mxu0
      %v518 = vadd.f32 0.0, %v517
      %v519 = vpop.f32.mrb[0].mxu0
      %520 = vmatprep.mubr.bf16.mxu0 0
      %521 = vmatmul.mubr.bf16.gmra.mrb[0].mxu0 %v365
      %v522 = vpop.f32.mrb[0].mxu0
      %v523 = vadd.f32 0.0, %v522
      %v524 = vpop.f32.mrb[0].mxu0
      %v525 = vpop.f32.mrb[0].mxu0
      %v526 = vadd.f32 0.0, %v525
      %v527 = vpop.f32.mrb[0].mxu0
      %528 = vmatprep.mubr.bf16.mxu0 0
      %529 = vmatmul.mubr.bf16.gmra.mrb[0].mxu0 %v368
      %v530 = vpop.f32.mrb[0].mxu0
      %v531 = vadd.f32 0.0, %v530
      %v532 = vpop.f32.mrb[0].mxu0
      %v533 = vpop.f32.mrb[0].mxu0
      %v534 = vadd.f32 0.0, %v533
      %v535 = vpop.f32.mrb[0].mxu0
      %536 = vmatprep.mubr.bf16.mxu0 0
      %537 = vmatmul.mubr.bf16.gmra.mrb[0].mxu0 %v371
      %v538 = vpop.f32.mrb[0].mxu0
      %v539 = vadd.f32 0.0, %v538
      %v540 = vpop.f32.mrb[0].mxu0
      %v541 = vpop.f32.mrb[0].mxu0
      %v542 = vadd.f32 0.0, %v541
      %v543 = vpop.f32.mrb[0].mxu0
      %544 = vmatprep.mubr.bf16.mxu0 0
      %545 = vmatmul.mubr.bf16.gmra.mrb[0].mxu0 %v374
      %v546 = vpop.f32.mrb[0].mxu0
      %v547 = vadd.f32 0.0, %v546
      %v548 = vpop.f32.mrb[0].mxu0
      %v549 = vpop.f32.mrb[0].mxu0
      %v550 = vadd.f32 0.0, %v549
      %v551 = vpop.f32.mrb[0].mxu0
      %552 = vmatprep.mubr.bf16.mxu0 0
      %553 = vmatmul.mubr.bf16.gmra.mrb[0].mxu0 %v377
      %v554 = vpop.f32.mrb[0].mxu0
      %v555 = vadd.f32 0.0, %v554
      %v556 = vpop.f32.mrb[0].mxu0
      %v557 = vpop.f32.mrb[0].mxu0
      %v558 = vadd.f32 0.0, %v557
      %v559 = vpop.f32.mrb[0].mxu0
      %560 = vmatprep.mubr.bf16.mxu0 0
      %561 = vmatmul.mubr.bf16.gmra.mrb[0].mxu0 %v380
      %v562 = vpop.f32.mrb[0].mxu0
      %v563 = vadd.f32 0.0, %v562
      %v564 = vpop.f32.mrb[0].mxu0
      %v565 = vpop.f32.mrb[0].mxu0
      %v566 = vadd.f32 0.0, %v565
      %v567 = vpop.f32.mrb[0].mxu0
      %568 = vmatprep.mubr.bf16.mxu0 0
      %569 = vmatmul.mubr.bf16.gmra.mrb[0].mxu0 %v383
      %v570 = vpop.f32.mrb[0].mxu0
      %v571 = vadd.f32 0.0, %v570
      %v572 = vpop.f32.mrb[0].mxu0
      %v573 = vpop.f32.mrb[0].mxu0
      %v574 = vadd.f32 0.0, %v573
      %v575 = vpop.f32.mrb[0].mxu0
      %576 = vmatprep.mubr.bf16.mxu0 0
      %577 = vmatmul.mubr.bf16.gmra.mrb[0].mxu0 %v386
      %v578 = vpop.f32.mrb[0].mxu0
      %v579 = vadd.f32 0.0, %v578
      %v580 = vpop.f32.mrb[0].mxu0
      %v581 = vpop.f32.mrb[0].mxu0
      %v582 = vadd.f32 0.0, %v581
      %v583 = vpop.f32.mrb[0].mxu0
      %584 = vdwg.mxu0
      %vm585 = vcmask 64512
      %v586 = vsel %vm585, %v427, -inf
      %v587 = vsel %vm585, %v430, -inf
      %v588 = vmax.f32 %v586, %v587
      %v589 = vsel %vm585, %v435, -inf
      %v590 = vmax.f32 %v588, %v589
      %v591 = vsel %vm585, %v438, -inf
      %v592 = vmax.f32 %v590, %v591
      %v593 = vsel %vm585, %v443, -inf
      %v594 = vmax.f32 %v592, %v593
      %v595 = vrot.slane %v594, 4
      %v596 = vmax.f32 %v594, %v595
      %v597 = vrot.slane %v596, 2
      %v598 = vmax.f32 %v596, %v597
      %v599 = vrot.slane %v598, 1
      %v600 = vmax.f32 %v598, %v599
      %v601 = vsel %vm585, %v446, -inf
      %v602 = vsel %vm585, %v451, -inf
      %v603 = vmax.f32 %v601, %v602
      %v604 = vsel %vm585, %v454, -inf
      %v605 = vmax.f32 %v603, %v604
      %v606 = vsel %vm585, %v459, -inf
      %v607 = vmax.f32 %v605, %v606
      %v608 = vsel %vm585, %v462, -inf
      %v609 = vmax.f32 %v607, %v608
      %v610 = vrot.slane %v609, 4
      %v611 = vmax.f32 %v609, %v610
      %v612 = vrot.slane %v611, 2
      %v613 = vmax.f32 %v611, %v612
      %v614 = vrot.slane %v613, 1
      %v615 = vmax.f32 %v613, %v614
      %v616 = vsel %vm585, %v467, -inf
      %v617 = vsel %vm585, %v470, -inf
      %v618 = vmax.f32 %v616, %v617
      %v619 = vsel %vm585, %v475, -inf
      %v620 = vmax.f32 %v618, %v619
      %v621 = vsel %vm585, %v478, -inf
      %v622 = vmax.f32 %v620, %v621
      %v623 = vsel %vm585, %v483, -inf
      %v624 = vmax.f32 %v622, %v623
      %v625 = vrot.slane %v624, 4
      %v626 = vmax.f32 %v624, %v625
      %v627 = vrot.slane %v626, 2
      %v628 = vmax.f32 %v626, %v627
      %v629 = vrot.slane %v628, 1
      %v630 = vmax.f32 %v628, %v629
      %v631 = vsel %vm585, %v486, -inf
      %v632 = vsel %vm585, %v491, -inf
      %v633 = vmax.f32 %v631, %v632
      %v634 = vsel %vm585, %v494, -inf
      %v635 = vmax.f32 %v633, %v634
      %v636 = vsel %vm585, %v499, -inf
      %v637 = vmax.f32 %v635, %v636
      %v638 = vsel %vm585, %v502, -inf
      %v639 = vmax.f32 %v637, %v638
      %v640 = vrot.slane %v639, 4
      %v641 = vmax.f32 %v639, %v640
      %v642 = vrot.slane %v641, 2
      %v643 = vmax.f32 %v641, %v642
      %v644 = vrot.slane %v643, 1
      %v645 = vmax.f32 %v643, %v644
      %v646 = vsel %vm585, %v507, -inf
      %v647 = vsel %vm585, %v510, -inf
      %v648 = vmax.f32 %v646, %v647
      %v649 = vsel %vm585, %v515, -inf
      %v650 = vmax.f32 %v648, %v649
      %v651 = vsel %vm585, %v518, -inf
      %v652 = vmax.f32 %v650, %v651
      %v653 = vsel %vm585, %v523, -inf
      %v654 = vmax.f32 %v652, %v653
      %v655 = vrot.slane %v654, 4
      %v656 = vmax.f32 %v654, %v655
      %v657 = vrot.slane %v656, 2
      %v658 = vmax.f32 %v656, %v657
      %v659 = vrot.slane %v658, 1
      %v660 = vmax.f32 %v658, %v659
      %v661 = vsel %vm585, %v526, -inf
      %v662 = vsel %vm585, %v531, -inf
      %v663 = vmax.f32 %v661, %v662
      %v664 = vsel %vm585, %v534, -inf
      %v665 = vmax.f32 %v663, %v664
      %v666 = vsel %vm585, %v539, -inf
      %v667 = vmax.f32 %v665, %v666
      %v668 = vsel %vm585, %v542, -inf
      %v669 = vmax.f32 %v667, %v668
      %v670 = vrot.slane %v669, 4
      %v671 = vmax.f32 %v669, %v670
      %v672 = vrot.slane %v671, 2
      %v673 = vmax.f32 %v671, %v672
      %v674 = vrot.slane %v673, 1
      %v675 = vmax.f32 %v673, %v674
      %v676 = vsel %vm585, %v547, -inf
      %v677 = vsel %vm585, %v550, -inf
      %v678 = vmax.f32 %v676, %v677
      %v679 = vsel %vm585, %v555, -inf
      %v680 = vmax.f32 %v678, %v679
      %v681 = vsel %vm585, %v558, -inf
      %v682 = vmax.f32 %v680, %v681
      %v683 = vsel %vm585, %v563, -inf
      %v684 = vmax.f32 %v682, %v683
      %v685 = vrot.slane %v684, 4
      %v686 = vmax.f32 %v684, %v685
      %v687 = vrot.slane %v686, 2
      %v688 = vmax.f32 %v686, %v687
      %v689 = vrot.slane %v688, 1
      %v690 = vmax.f32 %v688, %v689
      %v691 = vsel %vm585, %v566, -inf
      %v692 = vsel %vm585, %v571, -inf
      %v693 = vmax.f32 %v691, %v692
      %v694 = vsel %vm585, %v574, -inf
      %v695 = vmax.f32 %v693, %v694
      %v696 = vsel %vm585, %v579, -inf
      %v697 = vmax.f32 %v695, %v696
      %v698 = vsel %vm585, %v582, -inf
      %v699 = vmax.f32 %v697, %v698
      %v700 = vrot.slane %v699, 4
      %v701 = vmax.f32 %v699, %v700
      %v702 = vrot.slane %v701, 2
      %v703 = vmax.f32 %v701, %v702
      %v704 = vrot.slane %v703, 1
      %v705 = vmax.f32 %v703, %v704
      %v706 = vld [vmem:[%s2] sm:$0x1]
      %v708 = vlaneseq
      %v709 = vshrl.u32 %v708, 7
      %v710 = vsub.s32 0, %v709
      %v711 = vrot.slane %v706, %v710
      %v713 = vadd.f32 %v600, %v711
      %v714 = vadd.f32 %v615, %v711
      %v715 = vadd.f32 %v630, %v711
      %v716 = vadd.f32 %v645, %v711
      %v717 = vadd.f32 %v660, %v711
      %v718 = vadd.f32 %v675, %v711
      %v719 = vadd.f32 %v690, %v711
      %v720 = vadd.f32 %v705, %v711
      %vm721 = vcmp.gt.f32.partialorder %v713, 0.0
      %vm722 = vcmp.gt.f32.partialorder %v714, 0.0
      %vm723 = vcmp.gt.f32.partialorder %v715, 0.0
      %vm724 = vcmp.gt.f32.partialorder %v716, 0.0
      %vm725 = vcmp.gt.f32.partialorder %v717, 0.0
      %vm726 = vcmp.gt.f32.partialorder %v718, 0.0
      %vm727 = vcmp.gt.f32.partialorder %v719, 0.0
      %vm728 = vcmp.gt.f32.partialorder %v720, 0.0
      %v729 = vmin.f32 %v713, 0.0
      %v730 = vmin.f32 %v714, 0.0
      %v731 = vmin.f32 %v715, 0.0
      %v732 = vmin.f32 %v716, 0.0
      %v733 = vmin.f32 %v717, 0.0
      %v734 = vmin.f32 %v718, 0.0
      %v735 = vmin.f32 %v719, 0.0
      %v736 = vmin.f32 %v720, 0.0
      %v737 = vmul.f32 %v729, 1.442695
      %v738 = vpow.pop %v737
      %v739 = vmul.f32 %v730, 1.442695
      %v740 = vpow.pop %v739
      %v741 = vmul.f32 %v731, 1.442695
      %v742 = vpow.pop %v741
      %v743 = vmul.f32 %v732, 1.442695
      %v744 = vpow.pop %v743
      %v745 = vmul.f32 %v733, 1.442695
      %v746 = vpow.pop %v745
      %v747 = vmul.f32 %v734, 1.442695
      %v748 = vpow.pop %v747
      %v749 = vmul.f32 %v735, 1.442695
      %v750 = vpow.pop %v749
      %v751 = vmul.f32 %v736, 1.442695
      %v752 = vpow.pop %v751
      %v753 = vsub.f32 %v738, 1.0
      %v754 = vsub.f32 %v740, 1.0
      %v755 = vsub.f32 %v742, 1.0
      %v756 = vsub.f32 %v744, 1.0
      %v757 = vsub.f32 %v746, 1.0
      %v758 = vsub.f32 %v748, 1.0
      %v759 = vsub.f32 %v750, 1.0
      %v760 = vsub.f32 %v752, 1.0
      %v761 = vsel %vm721, %v713, %v753
      %v762 = vsel %vm722, %v714, %v754
      %v763 = vsel %vm723, %v715, %v755
      %v764 = vsel %vm724, %v716, %v756
      %v765 = vsel %vm725, %v717, %v757
      %v766 = vsel %vm726, %v718, %v758
      %v767 = vsel %vm727, %v719, %v759
      %v768 = vsel %vm728, %v720, %v760
      %v777 = vrot.slane %v762, 7
      %vm778 = vcmask 1041409
      %v779 = vsel %vm778, %v777, %v761
      %v780 = vrot.slane %v763, 6
      %vm781 = vcmask 1042434
      %v782 = vsel %vm781, %v780, %v779
      %v783 = vrot.slane %v764, 5
      %vm784 = vcmask 1043459
      %v785 = vsel %vm784, %v783, %v782
      %v786 = vrot.slane %v765, 4
      %vm787 = vcmask 1044484
      %v788 = vsel %vm787, %v786, %v785
      %v789 = vrot.slane %v766, 3
      %vm790 = vcmask 1045509
      %v791 = vsel %vm790, %v789, %v788
      %v792 = vrot.slane %v767, 2
      %vm793 = vcmask 1046534
      %v794 = vsel %vm793, %v792, %v791
      %v795 = vrot.slane %v768, 1
      %vm796 = vcmask 1047559
      %v797 = vsel %vm796, %v795, %v794
      %799 = vst.msk [vmem:[%s173] sm:$0xff] %vm585, %v797
      %p800 = scmp.lt.s32.totalorder %s14, 1
      %s801 = scalar_select %p800, %s14, 1
      %s802 = smul.addr %s801, 8
      %s803 = scalar_lea.vmem %s3, %s802
      // Predicated region
      $region33: #{tpu_custom_call.1} parent=31 // pred_check
        %p804 = pneg %p100
      $region34: #{tpu_custom_call.1} parent=31 // pred_check_branch
        %806 = sbr.rel (%p804) target = $region36
      $region35: #{tpu_custom_call.1} parent=31 // pred_region
        _
      $region36: #{tpu_custom_call.1} parent=31 // pred_fallthru
        _
    $region32: #{tpu_custom_call.1} parent=5 // pred_fallthru
      _
    %p807 = scmp.le.s32.totalorder 2, %s9
    // Predicated region
    $region37: #{tpu_custom_call.1} parent=5 // pred_check
      %p808 = pneg %p807
    $region38: #{tpu_custom_call.1} parent=5 // pred_check_branch
      %810 = sbr.rel (%p808) target = $region40
    $region39: #{tpu_custom_call.1} parent=5 // pred_region
      %s811 = ssub.s32 %s9, 2
      // Predicated region
      $region41: #{tpu_custom_call.1} parent=39 // pred_check
        %p812 = pneg %p106
      $region42: #{tpu_custom_call.1} parent=39 // pred_check_branch
        %814 = sbr.rel (%p812) target = $region44
      $region43: #{tpu_custom_call.1} parent=39 // pred_region
        %p815 = scmp.lt.s32.totalorder %s15, 1
        %s816 = scalar_select %p815, %s15, 1
        %s817 = smul.addr %s816, 8
        %s818 = scalar_lea.vmem %s3, %s817
      $region44: #{tpu_custom_call.1} parent=39 // pred_fallthru
        _
    $region40: #{tpu_custom_call.1} parent=5 // pred_fallthru
      _
  $region6: #{tpu_custom_call.1} parent=0 // loop_footer
    %s13 = sadd.s32 1, %s9
  $region7: #{tpu_custom_call.1} parent=0 // loop_footer_branch
    %8 = sbr.rel target = $region3
  $region8: #{tpu_custom_call.1} parent=0 // loop_exit
    _

</llo_original>
